<compile_context>
chip_gen: v7x
topology: tpu7x:2x2x1
jax: 0.10.0
libtpu: 0.0.40
codegen_flags: <defaults>
</compile_context>

<pallas_src>
import numpy as np
import jax
import jax.numpy as jnp
from jax import lax
from jax.experimental import pallas as pl
from jax.experimental.pallas import tpu as pltpu

# ---------------- model hyper-parameters (small, consistent with the module) ----
B = 2            # batch
N = 8            # sequence length
D = 32           # embed_dim
N_HEAD = 4       # num_heads
DK = D // N_HEAD
FC_RATIO = 2
DH = D * FC_RATIO    # feed-forward hidden dim
BN = B * N           # folded batch*sequence rows
C = N_HEAD * BN      # "head-block x key-row" columns of the big attention matmul
LN_EPS = 1e-5
NEG_INF = -1e30
LANES = 128

# ---------------- packed-slab row layout (sublane-multiple-of-8, lane-0 aligned) -
ROW_WQKV = 0          # (D, 3D)   fused Q/K/V weight
ROW_WO   = 32         # (D, D)    output projection
ROW_W1   = 64         # (D, DH)   FFN up
ROW_W2T  = 96         # (D, DH)   FFN down, pre-transposed
ROW_SEG  = 128        # (C, C)    block-diagonal ones (softmax denominator)
ROW_HMASK = 192       # (C, D)    head-lane mask for big K/V
ROW_BMASK = 256       # (BN, C)   additive 0 / -1e30 cross-batch mask
ROW_VECS = 272        # (8, 128)  LN gammas/betas + all biases
SLAB_ROWS = 280

# ---------------- constant-folded attention masks (built once, numpy) -----------
_r = np.arange(C)[:, None]
_d = np.arange(D)[None, :]
HMASK_NP = ((_r // BN) == (_d // DK)).astype(np.float32)            # (C, D)

_sr = np.arange(C)[:, None]
_sc = np.arange(C)[None, :]
SEG_ONES_NP = ((_sr // BN) == (_sc // BN)).astype(np.float32)       # (C, C)

_qi = np.arange(BN)[:, None]
_ci = np.arange(C)[None, :]
BMASK_NP = np.where((_qi // N) == ((_ci % BN) // N),
                    np.float32(0.0), np.float32(NEG_INF)).astype(np.float32)  # (BN, C)


def _layernorm(x, gamma, beta):
    # single pass: E[x] and E[x^2] together, var = E[x^2] - E[x]^2
    inv_d = 1.0 / x.shape[-1]
    mean = jnp.sum(x, axis=-1, keepdims=True) * inv_d
    mean_sq = jnp.sum(x * x, axis=-1, keepdims=True) * inv_d
    var = mean_sq - mean * mean
    return (x - mean) * lax.rsqrt(var + LN_EPS) * gamma + beta


def _gelu_exact(x):
    # nn.GELU() default: exact erf-based gelu (kept exact for the 1e-4 tolerance)
    return 0.5 * x * (1.0 + lax.erf(x * (1.0 / np.sqrt(2.0))))


def encoder_kernel(x_ref, slab_ref, out_ref):
    x = x_ref[...]                                        # (BN, D) f32

    # ---- static, aligned slices of the single packed parameter/constant slab ----
    wqkv  = slab_ref[ROW_WQKV:ROW_WQKV + D, 0:3 * D]      # (D, 3D)
    wo    = slab_ref[ROW_WO:ROW_WO + D, 0:D]              # (D, D)
    w1    = slab_ref[ROW_W1:ROW_W1 + D, 0:DH]             # (D, DH)
    w2t   = slab_ref[ROW_W2T:ROW_W2T + D, 0:DH]           # (D, DH) = w2.T
    seg   = slab_ref[ROW_SEG:ROW_SEG + C, 0:C]            # (C, C)  block-diag ones
    hmask = slab_ref[ROW_HMASK:ROW_HMASK + C, 0:D]        # (C, D)  head-lane mask
    bmask = slab_ref[ROW_BMASK:ROW_BMASK + BN, 0:C]       # (BN, C) additive mask
    vecs  = slab_ref[ROW_VECS:ROW_VECS + 8, :]            # (8, 128)

    ln1_g = vecs[0:1, 0:D]
    ln1_b = vecs[1:2, 0:D]
    ln2_g = vecs[2:3, 0:D]
    ln2_b = vecs[3:4, 0:D]
    bo    = vecs[4:5, 0:D]
    b2    = vecs[5:6, 0:D]
    b1    = vecs[6:7, 0:DH]
    bqkv  = vecs[7:8, 0:3 * D]

    # ---- LayerNorm 1 ----
    res = _layernorm(x, ln1_g, ln1_b)                     # (BN, D)

    # ---- fused Q/K/V projection: one (BN, D) @ (D, 3D) MXU push ----
    qkv = jnp.dot(res, wqkv, preferred_element_type=jnp.float32) + bqkv
    q = qkv[:, 0 * D:1 * D]                               # (BN, D)
    k = qkv[:, 1 * D:2 * D]
    v = qkv[:, 2 * D:3 * D]

    # ---- block-structured multi-head attention (precomputed masks) ----
    k_big = jnp.concatenate([k] * N_HEAD, axis=0) * hmask  # (C, D)
    v_big = jnp.concatenate([v] * N_HEAD, axis=0) * hmask  # (C, D)

    scale = 1.0 / np.sqrt(DK)
    # s[i, h*BN + j] = <q_h[i], k_h[j]>  (contract on last dim of both operands)
    s = lax.dot_general(q, k_big, (((1,), (1,)), ((), ())),
                        preferred_element_type=jnp.float32) * scale   # (BN, C)
    s = s + bmask                                          # cross-batch -> -1e30

    # per-row max subtraction (same constant across the row keeps per-segment
    # softmax exact); masked / cross-batch entries underflow to exactly 0
    m = jnp.max(s, axis=-1, keepdims=True)
    e = jnp.exp(s - m)

    # per-head-segment sums via block-diagonal ones matmul (stays lane-dense)
    denom = jnp.dot(e, seg, preferred_element_type=jnp.float32)       # (BN, C)
    denom = jnp.maximum(denom, 1e-30)      # guard: underflowed segment -> 0, not NaN
    r = pl.reciprocal(denom, approx=True)  # EUP slot
    r = r * (2.0 - denom * r)              # one Newton step -> ~f32 exact
    p = e * r                              # softmax probs, 0 for cross-batch

    # P @ V_big lands directly in the '(h d)' concatenated layout
    attn_cat = jnp.dot(p, v_big, preferred_element_type=jnp.float32)  # (BN, D)

    attn_out = jnp.dot(attn_cat, wo, preferred_element_type=jnp.float32) + bo
    out1 = x + attn_out                    # residual 1

    # ---- LayerNorm 2 + FeedForward ----
    res2 = _layernorm(out1, ln2_g, ln2_b)
    h1 = jnp.dot(res2, w1, preferred_element_type=jnp.float32) + b1
    h1 = _gelu_exact(h1)
    # h1 @ w2 == dot_general(h1, w2t) contracting on last dim of both (no transpose)
    ffn = lax.dot_general(h1, w2t, (((1,), (1,)), ((), ())),
                          preferred_element_type=jnp.float32) + b2

    out_ref[...] = (out1 + ffn).astype(out_ref.dtype)


_VMEM = pl.BlockSpec(memory_space=pltpu.MemorySpace.VMEM)


@jax.jit
def transformer_encoder(data, slab):
    """data: (B, N, D) float32.  slab: (SLAB_ROWS, 128) packed params+constants."""
    x2d = data.reshape(BN, D)
    out2d = pl.pallas_call(
        encoder_kernel,
        out_shape=jax.ShapeDtypeStruct((BN, D), jnp.float32),
        in_specs=[_VMEM, _VMEM],
        out_specs=_VMEM,
    )(x2d, slab)
    return out2d.reshape(B, N, D)


def pack_params(params):
    """One-time packing of all weights, biases, LN params and constant masks into
    a single lane-dense (SLAB_ROWS, 128) f32 slab. Hoisted out of the forward path."""
    f32 = lambda a: np.asarray(a, np.float32)
    slab = np.zeros((SLAB_ROWS, LANES), np.float32)

    slab[ROW_WQKV:ROW_WQKV + D, 0:3 * D] = np.concatenate(
        [f32(params["wq"]), f32(params["wk"]), f32(params["wv"])], axis=1)
    slab[ROW_WO:ROW_WO + D, 0:D] = f32(params["wo"])
    slab[ROW_W1:ROW_W1 + D, 0:DH] = f32(params["w1"])
    slab[ROW_W2T:ROW_W2T + D, 0:DH] = f32(params["w2"]).T
    slab[ROW_SEG:ROW_SEG + C, 0:C] = SEG_ONES_NP
    slab[ROW_HMASK:ROW_HMASK + C, 0:D] = HMASK_NP
    slab[ROW_BMASK:ROW_BMASK + BN, 0:C] = BMASK_NP

    vec = np.zeros((8, LANES), np.float32)
    vec[0, 0:D] = f32(params["ln1_g"]).reshape(-1)
    vec[1, 0:D] = f32(params["ln1_b"]).reshape(-1)
    vec[2, 0:D] = f32(params["ln2_g"]).reshape(-1)
    vec[3, 0:D] = f32(params["ln2_b"]).reshape(-1)
    vec[4, 0:D] = f32(params["bo"]).reshape(-1)
    vec[5, 0:D] = f32(params["b2"]).reshape(-1)
    vec[6, 0:DH] = f32(params["b1"]).reshape(-1)
    vec[7, 0:3 * D] = np.concatenate([f32(params["bq"]).reshape(-1),
                                      f32(params["bk"]).reshape(-1),
                                      f32(params["bv"]).reshape(-1)])
    slab[ROW_VECS:ROW_VECS + 8, :] = vec
    return jnp.asarray(slab)


def init_params(key):
    ks = jax.random.split(key, 8)
    s = 0.1
    return {
        "ln1_g": jnp.ones((1, D), jnp.float32),
        "ln1_b": jnp.zeros((1, D), jnp.float32),
        "ln2_g": jnp.ones((1, D), jnp.float32),
        "ln2_b": jnp.zeros((1, D), jnp.float32),
        "wq": s * jax.random.normal(ks[0], (D, D), jnp.float32),
        "bq": s * jax.random.normal(ks[1], (1, D), jnp.float32),
        "wk": s * jax.random.normal(ks[2], (D, D), jnp.float32),
        "bk": jnp.zeros((1, D), jnp.float32),
        "wv": s * jax.random.normal(ks[3], (D, D), jnp.float32),
        "bv": jnp.zeros((1, D), jnp.float32),
        "wo": s * jax.random.normal(ks[4], (D, D), jnp.float32),
        "bo": jnp.zeros((1, D), jnp.float32),
        "w1": s * jax.random.normal(ks[5], (D, DH), jnp.float32),
        "b1": s * jax.random.normal(ks[6], (1, DH), jnp.float32),
        "w2": s * jax.random.normal(ks[7], (DH, D), jnp.float32),
        "b2": jnp.zeros((1, D), jnp.float32),
    }


def reference(data, p):
    """Pure-JAX reference matching the PyTorch forward (dropout = identity)."""
    def ln(x, g, b):
        m = jnp.mean(x, -1, keepdims=True)
        v = jnp.mean((x - m) ** 2, -1, keepdims=True)
        return (x - m) / jnp.sqrt(v + LN_EPS) * g + b

    res = ln(data, p["ln1_g"], p["ln1_b"])
    q = res @ p["wq"] + p["bq"]
    k = res @ p["wk"] + p["bk"]
    v = res @ p["wv"] + p["bv"]
    q = q.reshape(B, N, N_HEAD, DK).transpose(0, 2, 1, 3)
    k = k.reshape(B, N, N_HEAD, DK).transpose(0, 2, 1, 3)
    v = v.reshape(B, N, N_HEAD, DK).transpose(0, 2, 1, 3)
    sc = jnp.einsum("bhqd,bhkd->bhqk", q, k) / np.sqrt(DK)
    attn = jax.nn.softmax(sc, axis=-1)
    o = jnp.einsum("bhqk,bhkd->bhqd", attn, v)
    o = o.transpose(0, 2, 1, 3).reshape(B, N, D)
    o = o @ p["wo"] + p["bo"]
    out1 = data + o
    res2 = ln(out1, p["ln2_g"], p["ln2_b"])
    h = res2 @ p["w1"] + p["b1"]
    h = jax.nn.gelu(h, approximate=False)
    ffn = h @ p["w2"] + p["b2"]
    return out1 + ffn


if __name__ == "__main__":
    key = jax.random.PRNGKey(0)
    kx, kp = jax.random.split(key)
    data = jax.random.normal(kx, (B, N, D), jnp.float32)
    params = init_params(kp)

    slab = pack_params(params)          # one-time packing, outside forward path

    out = jax.block_until_ready(transformer_encoder(data, slab))

    ref = reference(data, params)
    np.testing.assert_allclose(np.asarray(out), np.asarray(ref),
                               rtol=1e-4, atol=1e-4)
    print("KERNEL_OK")
</pallas_src>

<mosaic_0001>
module attributes {stable_mosaic.version = 11 : i64} {
  func.func @encoder_kernel(%arg0: memref<16x32xf32, #tpu.memory_space<vmem>>, %arg1: memref<280x128xf32, #tpu.memory_space<vmem>>, %arg2: memref<16x32xf32, #tpu.memory_space<vmem>>) attributes {dimension_semantics = [], scalar_prefetch = 0 : i64, scratch_operands = 0 : i64, tpu.core_type = #tpu.core_type<tc>} {
    %c0 = arith.constant 0 : index
    %c0_0 = arith.constant 0 : index
    %0 = vector.load %arg0[%c0, %c0_0] : memref<16x32xf32, #tpu.memory_space<vmem>>, vector<16x32xf32>
    %c0_1 = arith.constant 0 : index
    %c0_2 = arith.constant 0 : index
    %1 = vector.load %arg1[%c0_1, %c0_2] : memref<280x128xf32, #tpu.memory_space<vmem>>, vector<32x96xf32>
    %c32 = arith.constant 32 : index
    %c0_3 = arith.constant 0 : index
    %2 = vector.load %arg1[%c32, %c0_3] : memref<280x128xf32, #tpu.memory_space<vmem>>, vector<32x32xf32>
    %c64 = arith.constant 64 : index
    %c0_4 = arith.constant 0 : index
    %3 = vector.load %arg1[%c64, %c0_4] : memref<280x128xf32, #tpu.memory_space<vmem>>, vector<32x64xf32>
    %c96 = arith.constant 96 : index
    %c0_5 = arith.constant 0 : index
    %4 = vector.load %arg1[%c96, %c0_5] : memref<280x128xf32, #tpu.memory_space<vmem>>, vector<32x64xf32>
    %c128 = arith.constant 128 : index
    %c0_6 = arith.constant 0 : index
    %5 = vector.load %arg1[%c128, %c0_6] : memref<280x128xf32, #tpu.memory_space<vmem>>, vector<64x64xf32>
    %c192 = arith.constant 192 : index
    %c0_7 = arith.constant 0 : index
    %6 = vector.load %arg1[%c192, %c0_7] : memref<280x128xf32, #tpu.memory_space<vmem>>, vector<64x32xf32>
    %c256 = arith.constant 256 : index
    %c0_8 = arith.constant 0 : index
    %7 = vector.load %arg1[%c256, %c0_8] : memref<280x128xf32, #tpu.memory_space<vmem>>, vector<16x64xf32>
    %c272 = arith.constant 272 : index
    %c0_9 = arith.constant 0 : index
    %8 = vector.load %arg1[%c272, %c0_9] : memref<280x128xf32, #tpu.memory_space<vmem>>, vector<8x128xf32>
    %9 = vector.extract_strided_slice %8 {offsets = [0, 0], sizes = [1, 32], strides = [1, 1]} : vector<8x128xf32> to vector<1x32xf32>
    %10 = vector.extract_strided_slice %8 {offsets = [1, 0], sizes = [1, 32], strides = [1, 1]} : vector<8x128xf32> to vector<1x32xf32>
    %11 = vector.extract_strided_slice %8 {offsets = [2, 0], sizes = [1, 32], strides = [1, 1]} : vector<8x128xf32> to vector<1x32xf32>
    %12 = vector.extract_strided_slice %8 {offsets = [3, 0], sizes = [1, 32], strides = [1, 1]} : vector<8x128xf32> to vector<1x32xf32>
    %13 = vector.extract_strided_slice %8 {offsets = [4, 0], sizes = [1, 32], strides = [1, 1]} : vector<8x128xf32> to vector<1x32xf32>
    %14 = vector.extract_strided_slice %8 {offsets = [5, 0], sizes = [1, 32], strides = [1, 1]} : vector<8x128xf32> to vector<1x32xf32>
    %15 = vector.extract_strided_slice %8 {offsets = [6, 0], sizes = [1, 64], strides = [1, 1]} : vector<8x128xf32> to vector<1x64xf32>
    %16 = vector.extract_strided_slice %8 {offsets = [7, 0], sizes = [1, 96], strides = [1, 1]} : vector<8x128xf32> to vector<1x96xf32>
    %cst = arith.constant dense<0.000000e+00> : vector<16xf32>
    %17 = vector.multi_reduction <add>, %0, %cst [1] : vector<16x32xf32> to vector<16xf32>
    %18 = vector.shape_cast %17 : vector<16xf32> to vector<16x1xf32>
    %cst_10 = arith.constant 3.125000e-02 : f32
    %19 = vector.broadcast %cst_10 : f32 to vector<16x1xf32>
    %20 = arith.mulf %18, %19 : vector<16x1xf32>
    %21 = arith.mulf %0, %0 : vector<16x32xf32>
    %cst_11 = arith.constant dense<0.000000e+00> : vector<16xf32>
    %22 = vector.multi_reduction <add>, %21, %cst_11 [1] : vector<16x32xf32> to vector<16xf32>
    %23 = vector.shape_cast %22 : vector<16xf32> to vector<16x1xf32>
    %cst_12 = arith.constant 3.125000e-02 : f32
    %24 = vector.broadcast %cst_12 : f32 to vector<16x1xf32>
    %25 = arith.mulf %23, %24 : vector<16x1xf32>
    %26 = arith.mulf %20, %20 : vector<16x1xf32>
    %27 = arith.subf %25, %26 : vector<16x1xf32>
    %28 = vector.broadcast %20 : vector<16x1xf32> to vector<16x32xf32>
    %29 = arith.subf %0, %28 : vector<16x32xf32>
    %cst_13 = arith.constant 9.99999974E-6 : f32
    %30 = vector.broadcast %cst_13 : f32 to vector<16x1xf32>
    %31 = arith.addf %27, %30 : vector<16x1xf32>
    %32 = math.rsqrt %31 : vector<16x1xf32>
    %33 = vector.broadcast %32 : vector<16x1xf32> to vector<16x32xf32>
    %34 = arith.mulf %29, %33 : vector<16x32xf32>
    %35 = vector.broadcast %9 : vector<1x32xf32> to vector<16x32xf32>
    %36 = arith.mulf %34, %35 : vector<16x32xf32>
    %37 = vector.broadcast %10 : vector<1x32xf32> to vector<16x32xf32>
    %38 = arith.addf %36, %37 : vector<16x32xf32>
    %cst_14 = arith.constant dense<0.000000e+00> : vector<16x96xf32>
    %39 = tpu.matmul %38, %1, %cst_14 {dimension_numbers = #tpu.dot_dimension_numbers<[1], [0], [0], [1], [0, 0, 1, 1], [], []>} : vector<16x32xf32>, vector<32x96xf32>, vector<16x96xf32> -> vector<16x96xf32>
    %40 = vector.broadcast %16 : vector<1x96xf32> to vector<16x96xf32>
    %41 = arith.addf %39, %40 : vector<16x96xf32>
    %42 = vector.extract_strided_slice %41 {offsets = [0, 0], sizes = [16, 32], strides = [1, 1]} : vector<16x96xf32> to vector<16x32xf32>
    %43 = vector.extract_strided_slice %41 {offsets = [0, 32], sizes = [16, 32], strides = [1, 1]} : vector<16x96xf32> to vector<16x32xf32>
    %44 = vector.extract_strided_slice %41 {offsets = [0, 64], sizes = [16, 32], strides = [1, 1]} : vector<16x96xf32> to vector<16x32xf32>
    %45 = tpu.concatenate %43, %43, %43, %43 in 0 : vector<16x32xf32>, vector<16x32xf32>, vector<16x32xf32>, vector<16x32xf32> -> vector<64x32xf32>
    %46 = arith.mulf %45, %6 : vector<64x32xf32>
    %47 = tpu.concatenate %44, %44, %44, %44 in 0 : vector<16x32xf32>, vector<16x32xf32>, vector<16x32xf32>, vector<16x32xf32> -> vector<64x32xf32>
    %48 = arith.mulf %47, %6 : vector<64x32xf32>
    %cst_15 = arith.constant dense<0.000000e+00> : vector<16x64xf32>
    %49 = tpu.matmul %42, %46, %cst_15 {dimension_numbers = #tpu.dot_dimension_numbers<[1], [1], [0], [0], [0, 0, 1, 0], [], []>} : vector<16x32xf32>, vector<64x32xf32>, vector<16x64xf32> -> vector<16x64xf32>
    %cst_16 = arith.constant 0.353553385 : f32
    %50 = vector.broadcast %cst_16 : f32 to vector<16x64xf32>
    %51 = arith.mulf %49, %50 : vector<16x64xf32>
    %52 = arith.addf %51, %7 : vector<16x64xf32>
    %cst_17 = arith.constant dense<0xFF800000> : vector<16xf32>
    %53 = vector.multi_reduction <maximumf>, %52, %cst_17 [1] : vector<16x64xf32> to vector<16xf32>
    %54 = vector.shape_cast %53 : vector<16xf32> to vector<16x1xf32>
    %55 = vector.broadcast %54 : vector<16x1xf32> to vector<16x64xf32>
    %56 = arith.subf %52, %55 : vector<16x64xf32>
    %57 = math.exp %56 : vector<16x64xf32>
    %cst_18 = arith.constant dense<0.000000e+00> : vector<16x64xf32>
    %58 = tpu.matmul %57, %5, %cst_18 {dimension_numbers = #tpu.dot_dimension_numbers<[1], [0], [0], [1], [0, 0, 1, 1], [], []>} : vector<16x64xf32>, vector<64x64xf32>, vector<16x64xf32> -> vector<16x64xf32>
    %cst_19 = arith.constant 1.000000e-30 : f32
    %59 = vector.broadcast %cst_19 : f32 to vector<16x64xf32>
    %60 = arith.maximumf %58, %59 : vector<16x64xf32>
    %61 = tpu.reciprocal %60 {approx = true} : vector<16x64xf32> -> vector<16x64xf32>
    %62 = arith.mulf %60, %61 : vector<16x64xf32>
    %cst_20 = arith.constant 2.000000e+00 : f32
    %63 = vector.broadcast %cst_20 : f32 to vector<16x64xf32>
    %64 = arith.subf %63, %62 : vector<16x64xf32>
    %65 = arith.mulf %61, %64 : vector<16x64xf32>
    %66 = arith.mulf %57, %65 : vector<16x64xf32>
    %cst_21 = arith.constant dense<0.000000e+00> : vector<16x32xf32>
    %67 = tpu.matmul %66, %48, %cst_21 {dimension_numbers = #tpu.dot_dimension_numbers<[1], [0], [0], [1], [0, 0, 1, 1], [], []>} : vector<16x64xf32>, vector<64x32xf32>, vector<16x32xf32> -> vector<16x32xf32>
    %cst_22 = arith.constant dense<0.000000e+00> : vector<16x32xf32>
    %68 = tpu.matmul %67, %2, %cst_22 {dimension_numbers = #tpu.dot_dimension_numbers<[1], [0], [0], [1], [0, 0, 1, 1], [], []>} : vector<16x32xf32>, vector<32x32xf32>, vector<16x32xf32> -> vector<16x32xf32>
    %69 = vector.broadcast %13 : vector<1x32xf32> to vector<16x32xf32>
    %70 = arith.addf %68, %69 : vector<16x32xf32>
    %71 = arith.addf %0, %70 : vector<16x32xf32>
    %cst_23 = arith.constant dense<0.000000e+00> : vector<16xf32>
    %72 = vector.multi_reduction <add>, %71, %cst_23 [1] : vector<16x32xf32> to vector<16xf32>
    %73 = vector.shape_cast %72 : vector<16xf32> to vector<16x1xf32>
    %cst_24 = arith.constant 3.125000e-02 : f32
    %74 = vector.broadcast %cst_24 : f32 to vector<16x1xf32>
    %75 = arith.mulf %73, %74 : vector<16x1xf32>
    %76 = arith.mulf %71, %71 : vector<16x32xf32>
    %cst_25 = arith.constant dense<0.000000e+00> : vector<16xf32>
    %77 = vector.multi_reduction <add>, %76, %cst_25 [1] : vector<16x32xf32> to vector<16xf32>
    %78 = vector.shape_cast %77 : vector<16xf32> to vector<16x1xf32>
    %cst_26 = arith.constant 3.125000e-02 : f32
    %79 = vector.broadcast %cst_26 : f32 to vector<16x1xf32>
    %80 = arith.mulf %78, %79 : vector<16x1xf32>
    %81 = arith.mulf %75, %75 : vector<16x1xf32>
    %82 = arith.subf %80, %81 : vector<16x1xf32>
    %83 = vector.broadcast %75 : vector<16x1xf32> to vector<16x32xf32>
    %84 = arith.subf %71, %83 : vector<16x32xf32>
    %cst_27 = arith.constant 9.99999974E-6 : f32
    %85 = vector.broadcast %cst_27 : f32 to vector<16x1xf32>
    %86 = arith.addf %82, %85 : vector<16x1xf32>
    %87 = math.rsqrt %86 : vector<16x1xf32>
    %88 = vector.broadcast %87 : vector<16x1xf32> to vector<16x32xf32>
    %89 = arith.mulf %84, %88 : vector<16x32xf32>
    %90 = vector.broadcast %11 : vector<1x32xf32> to vector<16x32xf32>
    %91 = arith.mulf %89, %90 : vector<16x32xf32>
    %92 = vector.broadcast %12 : vector<1x32xf32> to vector<16x32xf32>
    %93 = arith.addf %91, %92 : vector<16x32xf32>
    %cst_28 = arith.constant dense<0.000000e+00> : vector<16x64xf32>
    %94 = tpu.matmul %93, %3, %cst_28 {dimension_numbers = #tpu.dot_dimension_numbers<[1], [0], [0], [1], [0, 0, 1, 1], [], []>} : vector<16x32xf32>, vector<32x64xf32>, vector<16x64xf32> -> vector<16x64xf32>
    %95 = vector.broadcast %15 : vector<1x64xf32> to vector<16x64xf32>
    %96 = arith.addf %94, %95 : vector<16x64xf32>
    %cst_29 = arith.constant 5.000000e-01 : f32
    %97 = vector.broadcast %cst_29 : f32 to vector<16x64xf32>
    %98 = arith.mulf %97, %96 : vector<16x64xf32>
    %cst_30 = arith.constant 0.707106769 : f32
    %99 = vector.broadcast %cst_30 : f32 to vector<16x64xf32>
    %100 = arith.mulf %96, %99 : vector<16x64xf32>
    %101 = math.erf %100 : vector<16x64xf32>
    %cst_31 = arith.constant 1.000000e+00 : f32
    %102 = vector.broadcast %cst_31 : f32 to vector<16x64xf32>
    %103 = arith.addf %102, %101 : vector<16x64xf32>
    %104 = arith.mulf %98, %103 : vector<16x64xf32>
    %cst_32 = arith.constant dense<0.000000e+00> : vector<16x32xf32>
    %105 = tpu.matmul %104, %4, %cst_32 {dimension_numbers = #tpu.dot_dimension_numbers<[1], [1], [0], [0], [0, 0, 1, 0], [], []>} : vector<16x64xf32>, vector<32x64xf32>, vector<16x32xf32> -> vector<16x32xf32>
    %106 = vector.broadcast %14 : vector<1x32xf32> to vector<16x32xf32>
    %107 = arith.addf %105, %106 : vector<16x32xf32>
    %108 = arith.addf %71, %107 : vector<16x32xf32>
    %c0_33 = arith.constant 0 : index
    %c0_34 = arith.constant 0 : index
    %109 = vector.load %arg2[%c0_33, %c0_34] : memref<16x32xf32, #tpu.memory_space<vmem>>, vector<16x32xf32>
    tpu.vector_store %arg2[%c0_33, %c0_34], %108 {strides = array<i32>} : memref<16x32xf32, #tpu.memory_space<vmem>>, vector<16x32xf32>,
    return
  }
}

</mosaic_0001>

<llo_original>
// kernel: transformer_encoder.1
$region0: #{transformer_encoder.1}
  #allocation0 [shape = 'u32[]', space=smem, size = 0x4, offset = 0x4, fixed_abs, tag = 'smem constant byte address 0x4 - core index']
  #allocation1 [shape = 'u32[144,128]{1,0:T(1,128)}', space=vmem, size = 0x12000, scoped, tag = 'internal scratch']
  %s0 = inlined_call_operand.hbm [shape: f32[16,32], index: 0, kind: input, shape index: {}]
  %s1 = inlined_call_operand.hbm [shape: f32[280,128], index: 1, kind: input, shape index: {}]
  %s2 = inlined_call_operand.hbm [shape: f32[16,32], index: 2, kind: output, shape index: {}]
  %s3 = sld [smem:[#allocation0]]
  $region26: #{transformer_encoder.1} parent=0
    _
  %s5 = ssub.s32 1, %s3
  %s6 = scalar_select 0, %s5, %s3
  $region1: #{transformer_encoder.1} parent=0
    #allocation2 [shape = 'u8[8192]{0}', space=vmem, size = 0x2000, scoped, tag = 'input window, operand 0, single buffered']
    #allocation3 [shape = 's32[1]{0}', space=sflag, size = 0x4, scoped, tag = 'scoped memory for transformer_encoder.1']
    #allocation4 [shape = 's32[1]{0}', space=sflag, size = 0x4, scoped, tag = 'scoped memory for transformer_encoder.1']
    #allocation5 [shape = 'u8[143360]{0}', space=vmem, size = 0x23000, scoped, tag = 'input window, operand 1, single buffered']
    #allocation6 [shape = 's32[1]{0}', space=sflag, size = 0x4, scoped, tag = 'scoped memory for transformer_encoder.1']
    #allocation7 [shape = 'u8[8192]{0}', space=vmem, size = 0x2000, scoped, tag = 'output window, operand 0, single buffered']
    %7 = vsyncpa [#allocation3], 0
    %8 = vsyncpa [#allocation6], 0
    %9 = vsyncpa [#allocation4], 0
    // Predicated region
    $region2: #{transformer_encoder.1} parent=1 // pred_check
      _
    $region3: #{transformer_encoder.1} parent=1 // pred_check_branch
      %11 = sbr.rel (0) target = $region5
    $region4: #{transformer_encoder.1} parent=1 // pred_region
      %s13 = ssub.s32 256, 256
      %14 = vsyncadd [#allocation3], %s13
      %s15 = sshll.u32 [#allocation2], 4
      %s16 = int_to_ptr.vmem [resolvable:$true] %s15
      %21 = dma.hbm_to_vmem [thread:$0]  %s0, 256, %s16, [#allocation3], 128, 128, 8
    $region5: #{transformer_encoder.1} parent=1 // pred_fallthru
      _
    // Predicated region
    $region6: #{transformer_encoder.1} parent=1 // pred_check
      _
    $region7: #{transformer_encoder.1} parent=1 // pred_check_branch
      %23 = sbr.rel (0) target = $region9
    $region8: #{transformer_encoder.1} parent=1 // pred_region
      %s25 = ssub.s32 4480, 4480
      %26 = vsyncadd [#allocation6], %s25
      %s27 = sshll.u32 [#allocation5], 4
      %s28 = int_to_ptr.vmem [resolvable:$true] %s27
      %33 = dma.hbm_to_vmem [thread:$0]  %s1, 4480, %s28, [#allocation6], 128, 128, 8
    $region9: #{transformer_encoder.1} parent=1 // pred_fallthru
      _
    // Predicated region
    $region10: #{transformer_encoder.1} parent=1 // pred_check
      _
    $region11: #{transformer_encoder.1} parent=1 // pred_check_branch
      %35 = sbr.rel (0) target = $region13
    $region12: #{transformer_encoder.1} parent=1 // pred_region
      %36 = dma.done [#allocation3], 256
    $region13: #{transformer_encoder.1} parent=1 // pred_fallthru
      _
    // Predicated region
    $region14: #{transformer_encoder.1} parent=1 // pred_check
      _
    $region15: #{transformer_encoder.1} parent=1 // pred_check_branch
      %38 = sbr.rel (0) target = $region17
    $region16: #{transformer_encoder.1} parent=1 // pred_region
      %39 = dma.done [#allocation6], 4480
    $region17: #{transformer_encoder.1} parent=1 // pred_fallthru
      _
    %v40 = vld [vmem:[#allocation2] sm:$0xff]
    %v41 = vld [vmem:[#allocation2 + $0x8] sm:$0xff]
    %v42 = vld [vmem:[#allocation5] sm:$0xff]
    %v43 = vld [vmem:[#allocation5 + $0x8] sm:$0xff]
    %v44 = vld [vmem:[#allocation5 + $0x10] sm:$0xff]
    %v45 = vld [vmem:[#allocation5 + $0x18] sm:$0xff]
    %v46 = vld [vmem:[#allocation5 + $0x20] sm:$0xff]
    %v47 = vld [vmem:[#allocation5 + $0x28] sm:$0xff]
    %v48 = vld [vmem:[#allocation5 + $0x30] sm:$0xff]
    %v49 = vld [vmem:[#allocation5 + $0x38] sm:$0xff]
    %v50 = vld [vmem:[#allocation5 + $0x40] sm:$0xff]
    %v51 = vld [vmem:[#allocation5 + $0x48] sm:$0xff]
    %v52 = vld [vmem:[#allocation5 + $0x50] sm:$0xff]
    %v53 = vld [vmem:[#allocation5 + $0x58] sm:$0xff]
    %v54 = vld [vmem:[#allocation5 + $0x60] sm:$0xff]
    %v55 = vld [vmem:[#allocation5 + $0x68] sm:$0xff]
    %v56 = vld [vmem:[#allocation5 + $0x70] sm:$0xff]
    %v57 = vld [vmem:[#allocation5 + $0x78] sm:$0xff]
    %v58 = vld [vmem:[#allocation5 + $0x80] sm:$0xff]
    %v59 = vld [vmem:[#allocation5 + $0x88] sm:$0xff]
    %v60 = vld [vmem:[#allocation5 + $0x90] sm:$0xff]
    %v61 = vld [vmem:[#allocation5 + $0x98] sm:$0xff]
    %v62 = vld [vmem:[#allocation5 + $0xa0] sm:$0xff]
    %v63 = vld [vmem:[#allocation5 + $0xa8] sm:$0xff]
    %v64 = vld [vmem:[#allocation5 + $0xb0] sm:$0xff]
    %v65 = vld [vmem:[#allocation5 + $0xb8] sm:$0xff]
    %v66 = vld [vmem:[#allocation5 + $0xc0] sm:$0xff]
    %v67 = vld [vmem:[#allocation5 + $0xc8] sm:$0xff]
    %v68 = vld [vmem:[#allocation5 + $0xd0] sm:$0xff]
    %v69 = vld [vmem:[#allocation5 + $0xd8] sm:$0xff]
    %v70 = vld [vmem:[#allocation5 + $0xe0] sm:$0xff]
    %v71 = vld [vmem:[#allocation5 + $0xe8] sm:$0xff]
    %v72 = vld [vmem:[#allocation5 + $0xf0] sm:$0xff]
    %v73 = vld [vmem:[#allocation5 + $0xf8] sm:$0xff]
    %v74 = vld [vmem:[#allocation5 + $0x100] sm:$0xff]
    %v75 = vld [vmem:[#allocation5 + $0x108] sm:$0xff]
    %v76 = vld [vmem:[#allocation5 + $0x110] sm:$0xff]
    %vm77 = vcmask 261120
    %v78 = vsel %vm77, %v40, 0.0
    %79 = vadd.xlane.f32.xlu0 %v78
    %v80 = vpop.xlane.xlu0 %79
    %v81 = vsel %vm77, %v41, 0.0
    %82 = vadd.xlane.f32.xlu0 %v81
    %v83 = vpop.xlane.xlu0 %82
    %v84 = vmul.f32 %v80, 0.03125
    %v85 = vmul.f32 %v83, 0.03125
    %v86 = vmul.f32 %v40, %v40
    %v87 = vmul.f32 %v41, %v41
    %v88 = vsel %vm77, %v86, 0.0
    %89 = vadd.xlane.f32.xlu0 %v88
    %v90 = vpop.xlane.xlu0 %89
    %v91 = vsel %vm77, %v87, 0.0
    %92 = vadd.xlane.f32.xlu0 %v91
    %v93 = vpop.xlane.xlu0 %92
    %v94 = vmul.f32 %v90, 0.03125
    %v95 = vmul.f32 %v93, 0.03125
    %v96 = vmul.f32 %v84, %v84
    %v97 = vmul.f32 %v85, %v85
    %v98 = vsub.f32 %v94, %v96
    %v99 = vsub.f32 %v95, %v97
    %v100 = vsub.f32 %v40, %v84
    %v101 = vsub.f32 %v41, %v85
    %v102 = vadd.f32 %v98, 1e-05
    %v103 = vadd.f32 %v99, 1e-05
    %v104 = vrsqrt.pop %v102
    %v105 = vrsqrt.pop %v103
    %v106 = vmul.f32 %v100, %v104
    %v107 = vmul.f32 %v101, %v105
    %v108 = vlaneseq
    %v109 = vshrl.u32 %v108, 7
    %v110 = vsub.s32 0, %v109
    %v111 = vrot.slane %v76, %v110
    %v112 = vmul.f32 %v106, %v111
    %v113 = vmul.f32 %v107, %v111
    %v114 = vlaneseq
    %v115 = vshrl.u32 %v114, 7
    %v116 = vsub.s32 1, %v115
    %v117 = vrot.slane %v76, %v116
    %v118 = vadd.f32 %v112, %v117
    %v119 = vadd.f32 %v113, %v117
    %v120 = vlaneseq
    %v121 = vshrl.u32 %v120, 7
    %v122 = vsub.s32 7, %v121
    %v123 = vrot.slane %v76, %v122
    %v125 = vsel %vm77, %v118, 0
    %v128 = vsel %vm77, %v119, 0
    %130 = vmatprep.subr.mxu0 0.0
    %131 = vmatpush1.msra.mxu0 %v42
    %132 = vmatprep.subr.mxu0 0.0
    %133 = vmatpush1.msra.mxu0 %v43
    %134 = vmatprep.subr.mxu0 0.0
    %135 = vmatpush1.msra.mxu0 %v44
    %136 = vmatprep.subr.mxu0 0.0
    %137 = vmatpush1.msra.mxu0 %v45
    %138 = vmatprep.subr.mxu0 0.0
    %139 = vmatpush1.msra.mxu0 0.0
    %140 = vmatprep.subr.mxu0 0.0
    %141 = vmatpush1.msra.mxu0 0.0
    %142 = vmatprep.subr.mxu0 0.0
    %143 = vmatpush1.msra.mxu0 0.0
    %144 = vmatprep.subr.mxu0 0.0
    %145 = vmatpush1.msra.mxu0 0.0
    %146 = vmatprep.subr.mxu0 0.0
    %147 = vmatpush1.msra.mxu0 0.0
    %148 = vmatprep.subr.mxu0 0.0
    %149 = vmatpush1.msra.mxu0 0.0
    %150 = vmatprep.subr.mxu0 0.0
    %151 = vmatpush1.msra.mxu0 0.0
    %152 = vmatprep.subr.mxu0 0.0
    %153 = vmatpush1.msra.mxu0 0.0
    %154 = vmatprep.subr.mxu0 0.0
    %155 = vmatpush1.msra.mxu0 0.0
    %156 = vmatprep.subr.mxu0 0.0
    %157 = vmatpush1.msra.mxu0 0.0
    %158 = vmatprep.subr.mxu0 0.0
    %159 = vmatpush1.msra.mxu0 0.0
    %160 = vmatprep.subr.mxu0 0.0
    %161 = vmatpush1.msra.mxu0 0.0
    %162 = vmatprep.subr.mxu0 0.0
    %163 = vmatpush1.msra.mxu0 0.0
    %164 = vmatprep.subr.mxu0 0.0
    %165 = vmatpush1.msra.mxu0 0.0
    %166 = vmatprep.subr.mxu0 0.0
    %167 = vmatpush1.msra.mxu0 0.0
    %168 = vmatprep.subr.mxu0 0.0
    %169 = vmatpush1.msra.mxu0 0.0
    %170 = vmatprep.subr.mxu0 0.0
    %171 = vmatpush1.msra.mxu0 0.0
    %172 = vmatprep.subr.mxu0 0.0
    %173 = vmatpush1.msra.mxu0 0.0
    %174 = vmatprep.subr.mxu0 0.0
    %175 = vmatpush1.msra.mxu0 0.0
    %176 = vmatprep.subr.mxu0 0.0
    %177 = vmatpush1.msra.mxu0 0.0
    %178 = vmatprep.subr.mxu0 0.0
    %179 = vmatpush1.msra.mxu0 0.0
    %180 = vmatprep.subr.mxu0 0.0
    %181 = vmatpush1.msra.mxu0 0.0
    %182 = vmatprep.subr.mxu0 0.0
    %183 = vmatpush1.msra.mxu0 0.0
    %184 = vmatprep.subr.mxu0 0.0
    %185 = vmatpush1.msra.mxu0 0.0
    %186 = vmatprep.subr.mxu0 0.0
    %187 = vmatpush1.msra.mxu0 0.0
    %188 = vmatprep.subr.mxu0 0.0
    %189 = vmatpush1.msra.mxu0 0.0
    %190 = vmatprep.subr.mxu0 0.0
    %191 = vmatpush1.msra.mxu0 0.0
    %192 = vmatprep.subr.mxu0 0.0
    %193 = vmatpush1.msra.mxu0 0.0
    %194 = vmatprep.mubr.f32.mxu0 0.0
    %195 = vmatmul.mubr.f32.gmra.mrb[0].mxu0 %v125
    %v196 = vpop.f32.mrb[0].mxu0
    %v197 = vadd.f32 %v123, %v196
    %v198 = vpop.f32.mrb[0].mxu0
    %199 = vmatprep.mubr.f32.mxu0 0.0
    %200 = vmatmul.mubr.f32.gmra.mrb[0].mxu0 %v128
    %v201 = vpop.f32.mrb[0].mxu0
    %v202 = vadd.f32 %v123, %v201
    %v203 = vpop.f32.mrb[0].mxu0
    %204 = vdwg.mxu0
    %213 = vrot.lane.b32.xlu0 %v66, 32
    %v214 = vpop.permute.xlu0 %213
    %215 = vrot.lane.b32.xlu0 %v67, 32
    %v216 = vpop.permute.xlu0 %215
    %217 = vrot.lane.b32.xlu0 %v68, 32
    %v218 = vpop.permute.xlu0 %217
    %219 = vrot.lane.b32.xlu0 %v69, 32
    %v220 = vpop.permute.xlu0 %219
    %221 = vrot.lane.b32.xlu0 %v70, 32
    %v222 = vpop.permute.xlu0 %221
    %223 = vrot.lane.b32.xlu0 %v71, 32
    %v224 = vpop.permute.xlu0 %223
    %225 = vrot.lane.b32.xlu0 %v72, 32
    %v226 = vpop.permute.xlu0 %225
    %227 = vrot.lane.b32.xlu0 %v73, 32
    %v228 = vpop.permute.xlu0 %227
    %v237 = vmul.f32 %v197, %v214
    %v238 = vmul.f32 %v202, %v216
    %v239 = vmul.f32 %v197, %v218
    %v240 = vmul.f32 %v202, %v220
    %v241 = vmul.f32 %v197, %v222
    %v242 = vmul.f32 %v202, %v224
    %v243 = vmul.f32 %v197, %v226
    %v244 = vmul.f32 %v202, %v228
    %245 = vrot.lane.b32.xlu0 %v66, 64
    %v246 = vpop.permute.xlu0 %245
    %247 = vrot.lane.b32.xlu0 %v67, 64
    %v248 = vpop.permute.xlu0 %247
    %249 = vrot.lane.b32.xlu0 %v68, 64
    %v250 = vpop.permute.xlu0 %249
    %251 = vrot.lane.b32.xlu0 %v69, 64
    %v252 = vpop.permute.xlu0 %251
    %253 = vrot.lane.b32.xlu0 %v70, 64
    %v254 = vpop.permute.xlu0 %253
    %255 = vrot.lane.b32.xlu0 %v71, 64
    %v256 = vpop.permute.xlu0 %255
    %257 = vrot.lane.b32.xlu0 %v72, 64
    %v258 = vpop.permute.xlu0 %257
    %259 = vrot.lane.b32.xlu0 %v73, 64
    %v260 = vpop.permute.xlu0 %259
    %v269 = vmul.f32 %v197, %v246
    %v270 = vmul.f32 %v202, %v248
    %v271 = vmul.f32 %v197, %v250
    %v272 = vmul.f32 %v202, %v252
    %v273 = vmul.f32 %v197, %v254
    %v274 = vmul.f32 %v202, %v256
    %v275 = vmul.f32 %v197, %v258
    %v276 = vmul.f32 %v202, %v260
    %285 = vrot.lane.b32.xlu0 %v237, 96
    %v286 = vpop.permute.xlu0 %285
    %287 = vrot.lane.b32.xlu0 %v238, 96
    %v288 = vpop.permute.xlu0 %287
    %289 = vrot.lane.b32.xlu0 %v239, 96
    %v290 = vpop.permute.xlu0 %289
    %291 = vrot.lane.b32.xlu0 %v240, 96
    %v292 = vpop.permute.xlu0 %291
    %293 = vrot.lane.b32.xlu0 %v241, 96
    %v294 = vpop.permute.xlu0 %293
    %295 = vrot.lane.b32.xlu0 %v242, 96
    %v296 = vpop.permute.xlu0 %295
    %297 = vrot.lane.b32.xlu0 %v243, 96
    %v298 = vpop.permute.xlu0 %297
    %299 = vrot.lane.b32.xlu0 %v244, 96
    %v300 = vpop.permute.xlu0 %299
    %v302 = vsel %vm77, %v197, 0
    %v305 = vsel %vm77, %v202, 0
    %v307 = vsel %vm77, %v286, 0
    %v309 = vsel %vm77, %v288, 0
    %v311 = vsel %vm77, %v290, 0
    %v313 = vsel %vm77, %v292, 0
    %v315 = vsel %vm77, %v294, 0
    %v317 = vsel %vm77, %v296, 0
    %v319 = vsel %vm77, %v298, 0
    %v321 = vsel %vm77, %v300, 0
    %323 = vmatprep.subr.mxu0 0.0
    %324 = vmatpush1.xpose.msra.mxu0 %v307
    %325 = vmatprep.subr.mxu0 0.0
    %326 = vmatpush1.xpose.msra.mxu0 %v309
    %327 = vmatprep.subr.mxu0 0.0
    %328 = vmatpush1.xpose.msra.mxu0 %v311
    %329 = vmatprep.subr.mxu0 0.0
    %330 = vmatpush1.xpose.msra.mxu0 %v313
    %331 = vmatprep.subr.mxu0 0.0
    %332 = vmatpush1.xpose.msra.mxu0 %v315
    %333 = vmatprep.subr.mxu0 0.0
    %334 = vmatpush1.xpose.msra.mxu0 %v317
    %335 = vmatprep.subr.mxu0 0.0
    %336 = vmatpush1.xpose.msra.mxu0 %v319
    %337 = vmatprep.subr.mxu0 0.0
    %338 = vmatpush1.xpose.msra.mxu0 %v321
    %339 = vmatprep.subr.mxu0 0.0
    %340 = vmatpush1.xpose.msra.mxu0 0.0
    %341 = vmatprep.subr.mxu0 0.0
    %342 = vmatpush1.xpose.msra.mxu0 0.0
    %343 = vmatprep.subr.mxu0 0.0
    %344 = vmatpush1.xpose.msra.mxu0 0.0
    %345 = vmatprep.subr.mxu0 0.0
    %346 = vmatpush1.xpose.msra.mxu0 0.0
    %347 = vmatprep.subr.mxu0 0.0
    %348 = vmatpush1.xpose.msra.mxu0 0.0
    %349 = vmatprep.subr.mxu0 0.0
    %350 = vmatpush1.xpose.msra.mxu0 0.0
    %351 = vmatprep.subr.mxu0 0.0
    %352 = vmatpush1.xpose.msra.mxu0 0.0
    %353 = vmatprep.subr.mxu0 0.0
    %354 = vmatpush1.xpose.msra.mxu0 0.0
    %355 = vmatprep.subr.mxu0 0.0
    %356 = vmatpush1.xpose.msra.mxu0 0.0
    %357 = vmatprep.subr.mxu0 0.0
    %358 = vmatpush1.xpose.msra.mxu0 0.0
    %359 = vmatprep.subr.mxu0 0.0
    %360 = vmatpush1.xpose.msra.mxu0 0.0
    %361 = vmatprep.subr.mxu0 0.0
    %362 = vmatpush1.xpose.msra.mxu0 0.0
    %363 = vmatprep.subr.mxu0 0.0
    %364 = vmatpush1.xpose.msra.mxu0 0.0
    %365 = vmatprep.subr.mxu0 0.0
    %366 = vmatpush1.xpose.msra.mxu0 0.0
    %367 = vmatprep.subr.mxu0 0.0
    %368 = vmatpush1.xpose.msra.mxu0 0.0
    %369 = vmatprep.subr.mxu0 0.0
    %370 = vmatpush1.xpose.msra.mxu0 0.0
    %371 = vmatprep.subr.mxu0 0.0
    %372 = vmatpush1.xpose.msra.mxu0 0.0
    %373 = vmatprep.subr.mxu0 0.0
    %374 = vmatpush1.xpose.msra.mxu0 0.0
    %375 = vmatprep.subr.mxu0 0.0
    %376 = vmatpush1.xpose.msra.mxu0 0.0
    %377 = vmatprep.subr.mxu0 0.0
    %378 = vmatpush1.xpose.msra.mxu0 0.0
    %379 = vmatprep.subr.mxu0 0.0
    %380 = vmatpush1.xpose.msra.mxu0 0.0
    %381 = vmatprep.subr.mxu0 0.0
    %382 = vmatpush1.xpose.msra.mxu0 0.0
    %383 = vmatprep.subr.mxu0 0.0
    %384 = vmatpush1.xpose.msra.mxu0 0.0
    %385 = vmatprep.subr.mxu0 0.0
    %386 = vmatpush1.xpose.msra.mxu0 0.0
    %387 = vmatprep.mubr.f32.mxu0 0.0
    %388 = vmatmul.mubr.f32.gmra.mrb[0].mxu0 %v302
    %v389 = vpop.f32.mrb[0].mxu0
    %v390 = vadd.f32 0.0, %v389
    %v391 = vpop.f32.mrb[0].mxu0
    %392 = vmatprep.mubr.f32.mxu0 0.0
    %393 = vmatmul.mubr.f32.gmra.mrb[0].mxu0 %v305
    %v394 = vpop.f32.mrb[0].mxu0
    %v395 = vadd.f32 0.0, %v394
    %v396 = vpop.f32.mrb[0].mxu0
    %397 = vdwg.mxu0
    %v398 = vmul.f32 %v390, 0.35355338
    %v399 = vmul.f32 %v395, 0.35355338
    %v400 = vadd.f32 %v398, %v74
    %v401 = vadd.f32 %v399, %v75
    %vm402 = vcmask 523264
    %v403 = vsel %vm402, %v400, -inf
    %404 = vmax.xlane.f32.xlu0 %v403
    %v405 = vpop.xlane.xlu0 %404
    %v406 = vsel %vm402, %v401, -inf
    %407 = vmax.xlane.f32.xlu0 %v406
    %v408 = vpop.xlane.xlu0 %407
    %v409 = vsub.f32 %v400, %v405
    %v410 = vsub.f32 %v401, %v408
    %v411 = vmul.f32 %v409, 1.442695
    %v412 = vpow.pop %v411
    %v413 = vmul.f32 %v410, 1.442695
    %v414 = vpow.pop %v413
    %v416 = vsel %vm402, %v412, 0
    %v419 = vsel %vm402, %v414, 0
    %421 = vmatprep.subr.mxu0 0.0
    %422 = vmatpush1.msra.mxu0 %v58
    %423 = vmatprep.subr.mxu0 0.0
    %424 = vmatpush1.msra.mxu0 %v59
    %425 = vmatprep.subr.mxu0 0.0
    %426 = vmatpush1.msra.mxu0 %v60
    %427 = vmatprep.subr.mxu0 0.0
    %428 = vmatpush1.msra.mxu0 %v61
    %429 = vmatprep.subr.mxu0 0.0
    %430 = vmatpush1.msra.mxu0 %v62
    %431 = vmatprep.subr.mxu0 0.0
    %432 = vmatpush1.msra.mxu0 %v63
    %433 = vmatprep.subr.mxu0 0.0
    %434 = vmatpush1.msra.mxu0 %v64
    %435 = vmatprep.subr.mxu0 0.0
    %436 = vmatpush1.msra.mxu0 %v65
    %437 = vmatprep.subr.mxu0 0.0
    %438 = vmatpush1.msra.mxu0 0.0
    %439 = vmatprep.subr.mxu0 0.0
    %440 = vmatpush1.msra.mxu0 0.0
    %441 = vmatprep.subr.mxu0 0.0
    %442 = vmatpush1.msra.mxu0 0.0
    %443 = vmatprep.subr.mxu0 0.0
    %444 = vmatpush1.msra.mxu0 0.0
    %445 = vmatprep.subr.mxu0 0.0
    %446 = vmatpush1.msra.mxu0 0.0
    %447 = vmatprep.subr.mxu0 0.0
    %448 = vmatpush1.msra.mxu0 0.0
    %449 = vmatprep.subr.mxu0 0.0
    %450 = vmatpush1.msra.mxu0 0.0
    %451 = vmatprep.subr.mxu0 0.0
    %452 = vmatpush1.msra.mxu0 0.0
    %453 = vmatprep.subr.mxu0 0.0
    %454 = vmatpush1.msra.mxu0 0.0
    %455 = vmatprep.subr.mxu0 0.0
    %456 = vmatpush1.msra.mxu0 0.0
    %457 = vmatprep.subr.mxu0 0.0
    %458 = vmatpush1.msra.mxu0 0.0
    %459 = vmatprep.subr.mxu0 0.0
    %460 = vmatpush1.msra.mxu0 0.0
    %461 = vmatprep.subr.mxu0 0.0
    %462 = vmatpush1.msra.mxu0 0.0
    %463 = vmatprep.subr.mxu0 0.0
    %464 = vmatpush1.msra.mxu0 0.0
    %465 = vmatprep.subr.mxu0 0.0
    %466 = vmatpush1.msra.mxu0 0.0
    %467 = vmatprep.subr.mxu0 0.0
    %468 = vmatpush1.msra.mxu0 0.0
    %469 = vmatprep.subr.mxu0 0.0
    %470 = vmatpush1.msra.mxu0 0.0
    %471 = vmatprep.subr.mxu0 0.0
    %472 = vmatpush1.msra.mxu0 0.0
    %473 = vmatprep.subr.mxu0 0.0
    %474 = vmatpush1.msra.mxu0 0.0
    %475 = vmatprep.subr.mxu0 0.0
    %476 = vmatpush1.msra.mxu0 0.0
    %477 = vmatprep.subr.mxu0 0.0
    %478 = vmatpush1.msra.mxu0 0.0
    %479 = vmatprep.subr.mxu0 0.0
    %480 = vmatpush1.msra.mxu0 0.0
    %481 = vmatprep.subr.mxu0 0.0
    %482 = vmatpush1.msra.mxu0 0.0
    %483 = vmatprep.subr.mxu0 0.0
    %484 = vmatpush1.msra.mxu0 0.0
    %485 = vmatprep.mubr.f32.mxu0 0.0
    %486 = vmatmul.mubr.f32.gmra.mrb[0].mxu0 %v416
    %v487 = vpop.f32.mrb[0].mxu0
    %v488 = vadd.f32 0.0, %v487
    %v489 = vpop.f32.mrb[0].mxu0
    %490 = vmatprep.mubr.f32.mxu0 0.0
    %491 = vmatmul.mubr.f32.gmra.mrb[0].mxu0 %v419
    %v492 = vpop.f32.mrb[0].mxu0
    %v493 = vadd.f32 0.0, %v492
    %v494 = vpop.f32.mrb[0].mxu0
    %495 = vdwg.mxu0
    %v496 = vmax.f32 %v488, 1e-30
    %v497 = vmax.f32 %v493, 1e-30
    %v498 = vrcp.pop %v496
    %v499 = vrcp.pop %v497
    %v500 = vmul.f32 %v496, %v498
    %v501 = vmul.f32 %v497, %v499
    %v502 = vsub.f32 2.0, %v500
    %v503 = vsub.f32 2.0, %v501
    %v504 = vmul.f32 %v498, %v502
    %v505 = vmul.f32 %v499, %v503
    %v506 = vmul.f32 %v412, %v504
    %v507 = vmul.f32 %v414, %v505
    %516 = vrot.lane.b32.xlu0 %v269, 64
    %v517 = vpop.permute.xlu0 %516
    %518 = vrot.lane.b32.xlu0 %v270, 64
    %v519 = vpop.permute.xlu0 %518
    %520 = vrot.lane.b32.xlu0 %v271, 64
    %v521 = vpop.permute.xlu0 %520
    %522 = vrot.lane.b32.xlu0 %v272, 64
    %v523 = vpop.permute.xlu0 %522
    %524 = vrot.lane.b32.xlu0 %v273, 64
    %v525 = vpop.permute.xlu0 %524
    %526 = vrot.lane.b32.xlu0 %v274, 64
    %v527 = vpop.permute.xlu0 %526
    %528 = vrot.lane.b32.xlu0 %v275, 64
    %v529 = vpop.permute.xlu0 %528
    %530 = vrot.lane.b32.xlu0 %v276, 64
    %v531 = vpop.permute.xlu0 %530
    %v541 = vsel %vm402, %v506, 0
    %v544 = vsel %vm402, %v507, 0
    %546 = vmatprep.subr.mxu0 0.0
    %547 = vmatpush1.msra.mxu0 %v517
    %548 = vmatprep.subr.mxu0 0.0
    %549 = vmatpush1.msra.mxu0 %v519
    %550 = vmatprep.subr.mxu0 0.0
    %551 = vmatpush1.msra.mxu0 %v521
    %552 = vmatprep.subr.mxu0 0.0
    %553 = vmatpush1.msra.mxu0 %v523
    %554 = vmatprep.subr.mxu0 0.0
    %555 = vmatpush1.msra.mxu0 %v525
    %556 = vmatprep.subr.mxu0 0.0
    %557 = vmatpush1.msra.mxu0 %v527
    %558 = vmatprep.subr.mxu0 0.0
    %559 = vmatpush1.msra.mxu0 %v529
    %560 = vmatprep.subr.mxu0 0.0
    %561 = vmatpush1.msra.mxu0 %v531
    %562 = vmatprep.subr.mxu0 0.0
    %563 = vmatpush1.msra.mxu0 0.0
    %564 = vmatprep.subr.mxu0 0.0
    %565 = vmatpush1.msra.mxu0 0.0
    %566 = vmatprep.subr.mxu0 0.0
    %567 = vmatpush1.msra.mxu0 0.0
    %568 = vmatprep.subr.mxu0 0.0
    %569 = vmatpush1.msra.mxu0 0.0
    %570 = vmatprep.subr.mxu0 0.0
    %571 = vmatpush1.msra.mxu0 0.0
    %572 = vmatprep.subr.mxu0 0.0
    %573 = vmatpush1.msra.mxu0 0.0
    %574 = vmatprep.subr.mxu0 0.0
    %575 = vmatpush1.msra.mxu0 0.0
    %576 = vmatprep.subr.mxu0 0.0
    %577 = vmatpush1.msra.mxu0 0.0
    %578 = vmatprep.subr.mxu0 0.0
    %579 = vmatpush1.msra.mxu0 0.0
    %580 = vmatprep.subr.mxu0 0.0
    %581 = vmatpush1.msra.mxu0 0.0
    %582 = vmatprep.subr.mxu0 0.0
    %583 = vmatpush1.msra.mxu0 0.0
    %584 = vmatprep.subr.mxu0 0.0
    %585 = vmatpush1.msra.mxu0 0.0
    %586 = vmatprep.subr.mxu0 0.0
    %587 = vmatpush1.msra.mxu0 0.0
    %588 = vmatprep.subr.mxu0 0.0
    %589 = vmatpush1.msra.mxu0 0.0
    %590 = vmatprep.subr.mxu0 0.0
    %591 = vmatpush1.msra.mxu0 0.0
    %592 = vmatprep.subr.mxu0 0.0
    %593 = vmatpush1.msra.mxu0 0.0
    %594 = vmatprep.subr.mxu0 0.0
    %595 = vmatpush1.msra.mxu0 0.0
    %596 = vmatprep.subr.mxu0 0.0
    %597 = vmatpush1.msra.mxu0 0.0
    %598 = vmatprep.subr.mxu0 0.0
    %599 = vmatpush1.msra.mxu0 0.0
    %600 = vmatprep.subr.mxu0 0.0
    %601 = vmatpush1.msra.mxu0 0.0
    %602 = vmatprep.subr.mxu0 0.0
    %603 = vmatpush1.msra.mxu0 0.0
    %604 = vmatprep.subr.mxu0 0.0
    %605 = vmatpush1.msra.mxu0 0.0
    %606 = vmatprep.subr.mxu0 0.0
    %607 = vmatpush1.msra.mxu0 0.0
    %608 = vmatprep.subr.mxu0 0.0
    %609 = vmatpush1.msra.mxu0 0.0
    %610 = vmatprep.mubr.f32.mxu0 0.0
    %611 = vmatmul.mubr.f32.gmra.mrb[0].mxu0 %v541
    %v612 = vpop.f32.mrb[0].mxu0
    %v613 = vadd.f32 0.0, %v612
    %v614 = vpop.f32.mrb[0].mxu0
    %615 = vmatprep.mubr.f32.mxu0 0.0
    %616 = vmatmul.mubr.f32.gmra.mrb[0].mxu0 %v544
    %v617 = vpop.f32.mrb[0].mxu0
    %v618 = vadd.f32 0.0, %v617
    %v619 = vpop.f32.mrb[0].mxu0
    %620 = vdwg.mxu0
    %v621 = vlaneseq
    %v622 = vshrl.u32 %v621, 7
    %v623 = vsub.s32 4, %v622
    %v624 = vrot.slane %v76, %v623
    %v626 = vsel %vm77, %v613, 0
    %v629 = vsel %vm77, %v618, 0
    %631 = vmatprep.subr.mxu0 0.0
    %632 = vmatpush1.msra.mxu0 %v46
    %633 = vmatprep.subr.mxu0 0.0
    %634 = vmatpush1.msra.mxu0 %v47
    %635 = vmatprep.subr.mxu0 0.0
    %636 = vmatpush1.msra.mxu0 %v48
    %637 = vmatprep.subr.mxu0 0.0
    %638 = vmatpush1.msra.mxu0 %v49
    %639 = vmatprep.subr.mxu0 0.0
    %640 = vmatpush1.msra.mxu0 0.0
    %641 = vmatprep.subr.mxu0 0.0
    %642 = vmatpush1.msra.mxu0 0.0
    %643 = vmatprep.subr.mxu0 0.0
    %644 = vmatpush1.msra.mxu0 0.0
    %645 = vmatprep.subr.mxu0 0.0
    %646 = vmatpush1.msra.mxu0 0.0
    %647 = vmatprep.subr.mxu0 0.0
    %648 = vmatpush1.msra.mxu0 0.0
    %649 = vmatprep.subr.mxu0 0.0
    %650 = vmatpush1.msra.mxu0 0.0
    %651 = vmatprep.subr.mxu0 0.0
    %652 = vmatpush1.msra.mxu0 0.0
    %653 = vmatprep.subr.mxu0 0.0
    %654 = vmatpush1.msra.mxu0 0.0
    %655 = vmatprep.subr.mxu0 0.0
    %656 = vmatpush1.msra.mxu0 0.0
    %657 = vmatprep.subr.mxu0 0.0
    %658 = vmatpush1.msra.mxu0 0.0
    %659 = vmatprep.subr.mxu0 0.0
    %660 = vmatpush1.msra.mxu0 0.0
    %661 = vmatprep.subr.mxu0 0.0
    %662 = vmatpush1.msra.mxu0 0.0
    %663 = vmatprep.subr.mxu0 0.0
    %664 = vmatpush1.msra.mxu0 0.0
    %665 = vmatprep.subr.mxu0 0.0
    %666 = vmatpush1.msra.mxu0 0.0
    %667 = vmatprep.subr.mxu0 0.0
    %668 = vmatpush1.msra.mxu0 0.0
    %669 = vmatprep.subr.mxu0 0.0
    %670 = vmatpush1.msra.mxu0 0.0
    %671 = vmatprep.subr.mxu0 0.0
    %672 = vmatpush1.msra.mxu0 0.0
    %673 = vmatprep.subr.mxu0 0.0
    %674 = vmatpush1.msra.mxu0 0.0
    %675 = vmatprep.subr.mxu0 0.0
    %676 = vmatpush1.msra.mxu0 0.0
    %677 = vmatprep.subr.mxu0 0.0
    %678 = vmatpush1.msra.mxu0 0.0
    %679 = vmatprep.subr.mxu0 0.0
    %680 = vmatpush1.msra.mxu0 0.0
    %681 = vmatprep.subr.mxu0 0.0
    %682 = vmatpush1.msra.mxu0 0.0
    %683 = vmatprep.subr.mxu0 0.0
    %684 = vmatpush1.msra.mxu0 0.0
    %685 = vmatprep.subr.mxu0 0.0
    %686 = vmatpush1.msra.mxu0 0.0
    %687 = vmatprep.subr.mxu0 0.0
    %688 = vmatpush1.msra.mxu0 0.0
    %689 = vmatprep.subr.mxu0 0.0
    %690 = vmatpush1.msra.mxu0 0.0
    %691 = vmatprep.subr.mxu0 0.0
    %692 = vmatpush1.msra.mxu0 0.0
    %693 = vmatprep.subr.mxu0 0.0
    %694 = vmatpush1.msra.mxu0 0.0
    %695 = vmatprep.mubr.f32.mxu0 0.0
    %696 = vmatmul.mubr.f32.gmra.mrb[0].mxu0 %v626
    %v697 = vpop.f32.mrb[0].mxu0
    %v698 = vadd.f32 %v624, %v697
    %v699 = vpop.f32.mrb[0].mxu0
    %700 = vmatprep.mubr.f32.mxu0 0.0
    %701 = vmatmul.mubr.f32.gmra.mrb[0].mxu0 %v629
    %v702 = vpop.f32.mrb[0].mxu0
    %v703 = vadd.f32 %v624, %v702
    %v704 = vpop.f32.mrb[0].mxu0
    %705 = vdwg.mxu0
    %v706 = vadd.f32 %v40, %v698
    %v707 = vadd.f32 %v41, %v703
    %v708 = vsel %vm77, %v706, 0.0
    %709 = vadd.xlane.f32.xlu0 %v708
    %v710 = vpop.xlane.xlu0 %709
    %v711 = vsel %vm77, %v707, 0.0
    %712 = vadd.xlane.f32.xlu0 %v711
    %v713 = vpop.xlane.xlu0 %712
    %v714 = vmul.f32 %v710, 0.03125
    %v715 = vmul.f32 %v713, 0.03125
    %v716 = vmul.f32 %v706, %v706
    %v717 = vmul.f32 %v707, %v707
    %v718 = vsel %vm77, %v716, 0.0
    %719 = vadd.xlane.f32.xlu0 %v718
    %v720 = vpop.xlane.xlu0 %719
    %v721 = vsel %vm77, %v717, 0.0
    %722 = vadd.xlane.f32.xlu0 %v721
    %v723 = vpop.xlane.xlu0 %722
    %v724 = vmul.f32 %v720, 0.03125
    %v725 = vmul.f32 %v723, 0.03125
    %v726 = vmul.f32 %v714, %v714
    %v727 = vmul.f32 %v715, %v715
    %v728 = vsub.f32 %v724, %v726
    %v729 = vsub.f32 %v725, %v727
    %v730 = vsub.f32 %v706, %v714
    %v731 = vsub.f32 %v707, %v715
    %v732 = vadd.f32 %v728, 1e-05
    %v733 = vadd.f32 %v729, 1e-05
    %v734 = vrsqrt.pop %v732
    %v735 = vrsqrt.pop %v733
    %v736 = vmul.f32 %v730, %v734
    %v737 = vmul.f32 %v731, %v735
    %v738 = vlaneseq
    %v739 = vshrl.u32 %v738, 7
    %v740 = vsub.s32 2, %v739
    %v741 = vrot.slane %v76, %v740
    %v742 = vmul.f32 %v736, %v741
    %v743 = vmul.f32 %v737, %v741
    %v744 = vlaneseq
    %v745 = vshrl.u32 %v744, 7
    %v746 = vsub.s32 3, %v745
    %v747 = vrot.slane %v76, %v746
    %v748 = vadd.f32 %v742, %v747
    %v749 = vadd.f32 %v743, %v747
    %v750 = vlaneseq
    %v751 = vshrl.u32 %v750, 7
    %v752 = vsub.s32 6, %v751
    %v753 = vrot.slane %v76, %v752
    %v755 = vsel %vm77, %v748, 0
    %v758 = vsel %vm77, %v749, 0
    %760 = vmatprep.subr.mxu0 0.0
    %761 = vmatpush1.msra.mxu0 %v50
    %762 = vmatprep.subr.mxu0 0.0
    %763 = vmatpush1.msra.mxu0 %v51
    %764 = vmatprep.subr.mxu0 0.0
    %765 = vmatpush1.msra.mxu0 %v52
    %766 = vmatprep.subr.mxu0 0.0
    %767 = vmatpush1.msra.mxu0 %v53
    %768 = vmatprep.subr.mxu0 0.0
    %769 = vmatpush1.msra.mxu0 0.0
    %770 = vmatprep.subr.mxu0 0.0
    %771 = vmatpush1.msra.mxu0 0.0
    %772 = vmatprep.subr.mxu0 0.0
    %773 = vmatpush1.msra.mxu0 0.0
    %774 = vmatprep.subr.mxu0 0.0
    %775 = vmatpush1.msra.mxu0 0.0
    %776 = vmatprep.subr.mxu0 0.0
    %777 = vmatpush1.msra.mxu0 0.0
    %778 = vmatprep.subr.mxu0 0.0
    %779 = vmatpush1.msra.mxu0 0.0
    %780 = vmatprep.subr.mxu0 0.0
    %781 = vmatpush1.msra.mxu0 0.0
    %782 = vmatprep.subr.mxu0 0.0
    %783 = vmatpush1.msra.mxu0 0.0
    %784 = vmatprep.subr.mxu0 0.0
    %785 = vmatpush1.msra.mxu0 0.0
    %786 = vmatprep.subr.mxu0 0.0
    %787 = vmatpush1.msra.mxu0 0.0
    %788 = vmatprep.subr.mxu0 0.0
    %789 = vmatpush1.msra.mxu0 0.0
    %790 = vmatprep.subr.mxu0 0.0
    %791 = vmatpush1.msra.mxu0 0.0
    %792 = vmatprep.subr.mxu0 0.0
    %793 = vmatpush1.msra.mxu0 0.0
    %794 = vmatprep.subr.mxu0 0.0
    %795 = vmatpush1.msra.mxu0 0.0
    %796 = vmatprep.subr.mxu0 0.0
    %797 = vmatpush1.msra.mxu0 0.0
    %798 = vmatprep.subr.mxu0 0.0
    %799 = vmatpush1.msra.mxu0 0.0
    %800 = vmatprep.subr.mxu0 0.0
    %801 = vmatpush1.msra.mxu0 0.0
    %802 = vmatprep.subr.mxu0 0.0
    %803 = vmatpush1.msra.mxu0 0.0
    %804 = vmatprep.subr.mxu0 0.0
    %805 = vmatpush1.msra.mxu0 0.0
    %806 = vmatprep.subr.mxu0 0.0
    %807 = vmatpush1.msra.mxu0 0.0
    %808 = vmatprep.subr.mxu0 0.0
    %809 = vmatpush1.msra.mxu0 0.0
    %810 = vmatprep.subr.mxu0 0.0
    %811 = vmatpush1.msra.mxu0 0.0
    %812 = vmatprep.subr.mxu0 0.0
    %813 = vmatpush1.msra.mxu0 0.0
    %814 = vmatprep.subr.mxu0 0.0
    %815 = vmatpush1.msra.mxu0 0.0
    %816 = vmatprep.subr.mxu0 0.0
    %817 = vmatpush1.msra.mxu0 0.0
    %818 = vmatprep.subr.mxu0 0.0
    %819 = vmatpush1.msra.mxu0 0.0
    %820 = vmatprep.subr.mxu0 0.0
    %821 = vmatpush1.msra.mxu0 0.0
    %822 = vmatprep.subr.mxu0 0.0
    %823 = vmatpush1.msra.mxu0 0.0
    %824 = vmatprep.mubr.f32.mxu0 0.0
    %825 = vmatmul.mubr.f32.gmra.mrb[0].mxu0 %v755
    %v826 = vpop.f32.mrb[0].mxu0
    %v827 = vadd.f32 %v753, %v826
    %v828 = vpop.f32.mrb[0].mxu0
    %829 = vmatprep.mubr.f32.mxu0 0.0
    %830 = vmatmul.mubr.f32.gmra.mrb[0].mxu0 %v758
    %v831 = vpop.f32.mrb[0].mxu0
    %v832 = vadd.f32 %v753, %v831
    %v833 = vpop.f32.mrb[0].mxu0
    %834 = vdwg.mxu0
    %v835 = vmul.f32 %v827, 0.5
    %v836 = vmul.f32 %v832, 0.5
    %v837 = vmul.f32 %v827, 0.70710677
    %v838 = vmul.f32 %v832, 0.70710677
    %v839 = verf.f32.pop %v837
    %v840 = verf.f32.pop %v838
    %v841 = vadd.f32 %v839, 1.0
    %v842 = vadd.f32 %v840, 1.0
    %v843 = vmul.f32 %v835, %v841
    %v844 = vmul.f32 %v836, %v842
    %v845 = vlaneseq
    %v846 = vshrl.u32 %v845, 7
    %v847 = vsub.s32 5, %v846
    %v848 = vrot.slane %v76, %v847
    %v850 = vsel %vm402, %v843, 0
    %v853 = vsel %vm402, %v844, 0
    %v856 = vsel %vm402, %v54, 0
    %v859 = vsel %vm402, %v55, 0
    %v862 = vsel %vm402, %v56, 0
    %v865 = vsel %vm402, %v57, 0
    %867 = vmatprep.subr.mxu0 0.0
    %868 = vmatpush1.xpose.msra.mxu0 %v856
    %869 = vmatprep.subr.mxu0 0.0
    %870 = vmatpush1.xpose.msra.mxu0 %v859
    %871 = vmatprep.subr.mxu0 0.0
    %872 = vmatpush1.xpose.msra.mxu0 %v862
    %873 = vmatprep.subr.mxu0 0.0
    %874 = vmatpush1.xpose.msra.mxu0 %v865
    %875 = vmatprep.subr.mxu0 0.0
    %876 = vmatpush1.xpose.msra.mxu0 0.0
    %877 = vmatprep.subr.mxu0 0.0
    %878 = vmatpush1.xpose.msra.mxu0 0.0
    %879 = vmatprep.subr.mxu0 0.0
    %880 = vmatpush1.xpose.msra.mxu0 0.0
    %881 = vmatprep.subr.mxu0 0.0
    %882 = vmatpush1.xpose.msra.mxu0 0.0
    %883 = vmatprep.subr.mxu0 0.0
    %884 = vmatpush1.xpose.msra.mxu0 0.0
    %885 = vmatprep.subr.mxu0 0.0
    %886 = vmatpush1.xpose.msra.mxu0 0.0
    %887 = vmatprep.subr.mxu0 0.0
    %888 = vmatpush1.xpose.msra.mxu0 0.0
    %889 = vmatprep.subr.mxu0 0.0
    %890 = vmatpush1.xpose.msra.mxu0 0.0
    %891 = vmatprep.subr.mxu0 0.0
    %892 = vmatpush1.xpose.msra.mxu0 0.0
    %893 = vmatprep.subr.mxu0 0.0
    %894 = vmatpush1.xpose.msra.mxu0 0.0
    %895 = vmatprep.subr.mxu0 0.0
    %896 = vmatpush1.xpose.msra.mxu0 0.0
    %897 = vmatprep.subr.mxu0 0.0
    %898 = vmatpush1.xpose.msra.mxu0 0.0
    %899 = vmatprep.subr.mxu0 0.0
    %900 = vmatpush1.xpose.msra.mxu0 0.0
    %901 = vmatprep.subr.mxu0 0.0
    %902 = vmatpush1.xpose.msra.mxu0 0.0
    %903 = vmatprep.subr.mxu0 0.0
    %904 = vmatpush1.xpose.msra.mxu0 0.0
    %905 = vmatprep.subr.mxu0 0.0
    %906 = vmatpush1.xpose.msra.mxu0 0.0
    %907 = vmatprep.subr.mxu0 0.0
    %908 = vmatpush1.xpose.msra.mxu0 0.0
    %909 = vmatprep.subr.mxu0 0.0
    %910 = vmatpush1.xpose.msra.mxu0 0.0
    %911 = vmatprep.subr.mxu0 0.0
    %912 = vmatpush1.xpose.msra.mxu0 0.0
    %913 = vmatprep.subr.mxu0 0.0
    %914 = vmatpush1.xpose.msra.mxu0 0.0
    %915 = vmatprep.subr.mxu0 0.0
    %916 = vmatpush1.xpose.msra.mxu0 0.0
    %917 = vmatprep.subr.mxu0 0.0
    %918 = vmatpush1.xpose.msra.mxu0 0.0
    %919 = vmatprep.subr.mxu0 0.0
    %920 = vmatpush1.xpose.msra.mxu0 0.0
    %921 = vmatprep.subr.mxu0 0.0
    %922 = vmatpush1.xpose.msra.mxu0 0.0
    %923 = vmatprep.subr.mxu0 0.0
    %924 = vmatpush1.xpose.msra.mxu0 0.0
    %925 = vmatprep.subr.mxu0 0.0
    %926 = vmatpush1.xpose.msra.mxu0 0.0
    %927 = vmatprep.subr.mxu0 0.0
    %928 = vmatpush1.xpose.msra.mxu0 0.0
    %929 = vmatprep.subr.mxu0 0.0
    %930 = vmatpush1.xpose.msra.mxu0 0.0
    %931 = vmatprep.mubr.f32.mxu0 0.0
    %932 = vmatmul.mubr.f32.gmra.mrb[0].mxu0 %v850
    %v933 = vpop.f32.mrb[0].mxu0
    %v934 = vadd.f32 %v848, %v933
    %v935 = vpop.f32.mrb[0].mxu0
    %936 = vmatprep.mubr.f32.mxu0 0.0
    %937 = vmatmul.mubr.f32.gmra.mrb[0].mxu0 %v853
    %v938 = vpop.f32.mrb[0].mxu0
    %v939 = vadd.f32 %v848, %v938
    %v940 = vpop.f32.mrb[0].mxu0
    %941 = vdwg.mxu0
    %v942 = vadd.f32 %v706, %v934
    %v943 = vadd.f32 %v707, %v939
    %944 = vst.msk [vmem:[#allocation7] sm:$0xff] %vm77, %v942
    %945 = vst.msk [vmem:[#allocation7 + $0x8] sm:$0xff] %vm77, %v943
    // Predicated region
    $region18: #{transformer_encoder.1} parent=1 // pred_check
      _
    $region19: #{transformer_encoder.1} parent=1 // pred_check_branch
      %947 = sbr.rel (0) target = $region21
    $region20: #{transformer_encoder.1} parent=1 // pred_region
      %s949 = ssub.s32 256, 256
      %950 = vsyncadd [#allocation4], %s949
      %s951 = sshll.u32 [#allocation7], 4
      %s952 = int_to_ptr.vmem [resolvable:$true] %s951
      %957 = dma.vmem_to_hbm [thread:$0]  %s952, 256, %s2, [#allocation4], 128, 128, 8
    $region21: #{transformer_encoder.1} parent=1 // pred_fallthru
      _
    // Predicated region
    $region22: #{transformer_encoder.1} parent=1 // pred_check
      _
    $region23: #{transformer_encoder.1} parent=1 // pred_check_branch
      %959 = sbr.rel (0) target = $region25
    $region24: #{transformer_encoder.1} parent=1 // pred_region
      %960 = dma.done [#allocation4], 256
    $region25: #{transformer_encoder.1} parent=1 // pred_fallthru
      _
    %961 = vsyncpa [#allocation3], 1
    %962 = vsyncpa [#allocation6], 1
    %963 = vsyncpa [#allocation4], 1

</llo_original>
